<compile_context>
chip_gen: v5e
topology: v5e:2x2
jax: 0.10.0
libtpu: 0.0.40
codegen_flags: <defaults>
</compile_context>

<pallas_src>
import functools

import jax
import jax.numpy as jnp
from jax.experimental import pallas as pl
from jax.experimental.pallas import tpu as pltpu


# ---------------------------------------------------------------------------
# VMEM budgeting (generation-aware: 128 MiB VMEM on v5e/v6e, 64 MiB on v7x).
# ---------------------------------------------------------------------------
def _vmem_budget_and_limit():
    cap = 64 << 20  # conservative fallback = v7x physical VMEM
    try:
        info = pltpu.get_tpu_info()
        cap = int(getattr(info, "vmem_capacity_bytes", cap)) or cap
    except Exception:
        pass
    # ~70% of physical VMEM for the double-buffered working set, scoped limit a
    # bit above it while keeping headroom below the physical capacity.
    budget = min((cap * 7) // 10, 100 << 20)
    limit = int(min(budget + (8 << 20), (cap * 85) // 100))
    return budget, limit


# Only split a fits-in-one-tile feature axis when each half still moves multiple
# MiB, so the extra ~0.35us grid step is negligible and v7x's 2 TCs both work.
_SPLIT_BYTES = 8 << 20


def _choose_feature_tile(n, d, itemsize, budget):
    """Budget-driven lane-dense feature tile; None -> use the streamed path."""
    # Dominant VMEM cost per feature lane per grid step:
    # double-buffered x-in + x_hat-out columns (+ tiny (1,)-row params/outputs).
    per_lane = 4 * n * itemsize + 24
    td_max = (budget // per_lane) // 128 * 128
    if td_max < 128:
        return None  # even an (N, 128) column blows the budget -> streamed stats
    if d <= td_max:
        if d >= 256 and n * d * itemsize >= _SPLIT_BYTES:
            # Two even 128-aligned tiles: lets the "parallel" D axis shard across
            # v7x's two TensorCores while each tile stays DMA-efficient.
            return min(td_max, pl.cdiv(pl.cdiv(d, 2), 128) * 128)
        return d  # whole feature axis in one resident tile
    return td_max


def _choose_streamed_tiles(n, d, itemsize, budget):
    """Tiles for the large-N streamed path (pass-2 working set dominates)."""
    td = d if d <= 512 else 512
    per_row = 4 * td * itemsize + 64   # double-buffered x in + x_hat out
    tn = max(8, ((budget // per_row) // 8) * 8)
    n8 = max(8, (n // 8) * 8)
    return min(tn, n8), td


# ---------------------------------------------------------------------------
# Single-pass kernel: whole batch resident per feature tile.
# ---------------------------------------------------------------------------
def _batchnorm_kernel(x_ref, gamma_ref, beta_ref, xhat_ref, ld_ref, *, eps, n):
    x = x_ref[...].astype(jnp.float32)                       # (N, TD)

    m = jnp.mean(x, axis=0, keepdims=True)                   # (1, TD)
    diff = x - m
    # torch.var default: unbiased (divide by N-1). The batch axis is never tiled
    # here, so n is the true batch size even for the ragged last feature block.
    v = jnp.sum(diff * diff, axis=0, keepdims=True) / jnp.float32(n - 1) + eps

    gamma = gamma_ref[...].astype(jnp.float32)                # (1, TD)
    beta = beta_ref[...].astype(jnp.float32)                  # (1, TD)

    scale = jax.lax.rsqrt(v) * jnp.exp(gamma)                 # folded (1, TD) scale
    xhat_ref[...] = (diff * scale + beta).astype(xhat_ref.dtype)

    # Per-feature log-det terms; summed once in the wrapper (lane-dense, race-free
    # across parallel feature tiles). Ragged-lane garbage is masked on write.
    ld_ref[...] = gamma - 0.5 * jnp.log(v)


def _batchnorm_single_pass(x, gamma, beta, eps, td, vmem_limit):
    N, D = x.shape
    itemsize = jnp.dtype(x.dtype).itemsize
    num_tiles = pl.cdiv(D, td)

    cost = pl.CostEstimate(
        flops=int(6 * N * D),
        transcendentals=int(3 * D),
        bytes_accessed=int(2 * N * D * itemsize + 4 * D * 4),
    )

    x_hat, ld_terms = pl.pallas_call(
        functools.partial(_batchnorm_kernel, eps=eps, n=N),
        out_shape=(
            jax.ShapeDtypeStruct((N, D), x.dtype),
            jax.ShapeDtypeStruct((1, D), jnp.float32),
        ),
        grid=(num_tiles,),
        in_specs=[
            pl.BlockSpec((N, td), lambda j: (0, j)),
            pl.BlockSpec((1, td), lambda j: (0, j)),
            pl.BlockSpec((1, td), lambda j: (0, j)),
        ],
        out_specs=(
            pl.BlockSpec((N, td), lambda j: (0, j)),
            pl.BlockSpec((1, td), lambda j: (0, j)),
        ),
        compiler_params=pltpu.CompilerParams(
            dimension_semantics=("parallel",),
            vmem_limit_bytes=vmem_limit,
        ),
        cost_estimate=cost,
    )(x, gamma, beta)

    log_det = jnp.sum(ld_terms)
    return x_hat, log_det


# ---------------------------------------------------------------------------
# Streamed two-pass path for large batches (N column does not fit VMEM).
# ---------------------------------------------------------------------------
def _stats_kernel(x_ref, gamma_ref, m_ref, scale_ref, ld_ref, sum_sc, ssq_sc,
                  *, eps, n, tn):
    i = pl.program_id(1)

    @pl.when(i == 0)
    def _():
        sum_sc[...] = jnp.zeros_like(sum_sc)
        ssq_sc[...] = jnp.zeros_like(ssq_sc)

    x = x_ref[...].astype(jnp.float32)                        # (TN, TD)
    # Mask rows past the true batch size (ragged last N block).
    row = jax.lax.broadcasted_iota(jnp.int32, x.shape, 0)
    valid = (i * tn + row) < n
    xm = jnp.where(valid, x, 0.0)
    sum_sc[...] += jnp.sum(xm, axis=0, keepdims=True)
    ssq_sc[...] += jnp.sum(xm * xm, axis=0, keepdims=True)

    @pl.when(i == pl.num_programs(1) - 1)
    def _():
        s = sum_sc[...]
        ss = ssq_sc[...]
        mean = s / jnp.float32(n)
        # Unbiased variance from streamed sums.
        # TODO(synk): per-chunk mean-shift if f32 cancellation ever bites here.
        v = (ss - s * mean) / jnp.float32(n - 1) + eps
        g = gamma_ref[...].astype(jnp.float32)
        m_ref[...] = mean
        scale_ref[...] = jax.lax.rsqrt(v) * jnp.exp(g)
        ld_ref[...] = g - 0.5 * jnp.log(v)


def _normalize_kernel(x_ref, m_ref, scale_ref, beta_ref, o_ref):
    x = x_ref[...].astype(jnp.float32)
    o_ref[...] = ((x - m_ref[...]) * scale_ref[...]
                  + beta_ref[...].astype(jnp.float32)).astype(o_ref.dtype)


def batchnorm_forward_streamed(x, gamma, beta, eps=1e-5, *, tile_n=None, tile_d=None):
    """Two-pass BatchNorm for batches too large to keep resident in VMEM."""
    N, D = x.shape
    itemsize = jnp.dtype(x.dtype).itemsize
    budget, vmem_limit = _vmem_budget_and_limit()
    tn_def, td_def = _choose_streamed_tiles(N, D, itemsize, budget)
    tn = tile_n if tile_n is not None else tn_def
    td = tile_d if tile_d is not None else td_def

    nd = pl.cdiv(D, td)
    nn = pl.cdiv(N, tn)
    stat_shape = jax.ShapeDtypeStruct((1, D), jnp.float32)

    # Pass 1: per-feature sum / sum-of-squares accumulated over the N grid axis.
    m, scale, ld_terms = pl.pallas_call(
        functools.partial(_stats_kernel, eps=eps, n=N, tn=tn),
        out_shape=(stat_shape, stat_shape, stat_shape),
        grid=(nd, nn),
        in_specs=[
            pl.BlockSpec((tn, td), lambda j, i: (i, j)),
            pl.BlockSpec((1, td), lambda j, i: (0, j)),
        ],
        out_specs=(
            pl.BlockSpec((1, td), lambda j, i: (0, j)),
            pl.BlockSpec((1, td), lambda j, i: (0, j)),
            pl.BlockSpec((1, td), lambda j, i: (0, j)),
        ),
        scratch_shapes=[
            pltpu.VMEM((1, td), jnp.float32),
            pltpu.VMEM((1, td), jnp.float32),
        ],
        compiler_params=pltpu.CompilerParams(
            dimension_semantics=("parallel", "arbitrary"),
            vmem_limit_bytes=vmem_limit,
        ),
        cost_estimate=pl.CostEstimate(
            flops=int(3 * N * D),
            transcendentals=int(3 * D),
            bytes_accessed=int(N * D * itemsize + 4 * D * 4),
        ),
    )(x, gamma)

    # Pass 2: elementwise normalize + affine.
    x_hat = pl.pallas_call(
        _normalize_kernel,
        out_shape=jax.ShapeDtypeStruct((N, D), x.dtype),
        grid=(nd, nn),
        in_specs=[
            pl.BlockSpec((tn, td), lambda j, i: (i, j)),
            pl.BlockSpec((1, td), lambda j, i: (0, j)),
            pl.BlockSpec((1, td), lambda j, i: (0, j)),
            pl.BlockSpec((1, td), lambda j, i: (0, j)),
        ],
        out_specs=pl.BlockSpec((tn, td), lambda j, i: (i, j)),
        compiler_params=pltpu.CompilerParams(
            dimension_semantics=("parallel", "parallel"),
            vmem_limit_bytes=vmem_limit,
        ),
        cost_estimate=pl.CostEstimate(
            flops=int(3 * N * D),
            transcendentals=0,
            bytes_accessed=int(2 * N * D * itemsize + 3 * D * 4),
        ),
    )(x, m, scale, beta)

    return x_hat, jnp.sum(ld_terms)


# ---------------------------------------------------------------------------
# Public entry point.
# ---------------------------------------------------------------------------
def batchnorm_forward(x, gamma, beta, eps=1e-5, *, tile_d=None):
    """Pallas BatchNorm forward. x: (N, D); gamma, beta: (1, D).

    Returns (x_hat (N, D), log_det scalar).
    """
    N, D = x.shape
    itemsize = jnp.dtype(x.dtype).itemsize
    budget, vmem_limit = _vmem_budget_and_limit()

    td = tile_d if tile_d is not None else _choose_feature_tile(N, D, itemsize, budget)
    if td is None:
        # Batch column doesn't fit in VMEM: streamed two-pass statistics.
        return batchnorm_forward_streamed(x, gamma, beta, eps)
    return _batchnorm_single_pass(x, gamma, beta, eps, td, vmem_limit)


def batchnorm_reference(x, gamma, beta, eps=1e-5):
    """Pure-JAX reference mirroring the PyTorch training-mode forward."""
    m = jnp.mean(x, axis=0)
    v = jnp.var(x, axis=0, ddof=1) + eps
    x_hat = (x - m) / jnp.sqrt(v)
    x_hat = x_hat * jnp.exp(gamma) + beta
    log_det = jnp.sum(gamma - 0.5 * jnp.log(v))
    return x_hat, log_det


if __name__ == "__main__":
    key = jax.random.PRNGKey(0)
    k0, k1, k2, k3, k4, k5 = jax.random.split(key, 6)

    # Case 1: small shape implied by the module (batch=8, hidden=32) — single tile.
    N, D = 8, 32
    x = jax.random.normal(k0, (N, D), dtype=jnp.float32)
    gamma = 0.01 * jax.random.normal(k1, (1, D), dtype=jnp.float32)
    beta = 0.01 * jax.random.normal(k2, (1, D), dtype=jnp.float32)

    x_hat, log_det = batchnorm_forward(x, gamma, beta, eps=1e-5)
    jax.block_until_ready((x_hat, log_det))
    ref_xhat, ref_ld = batchnorm_reference(x, gamma, beta, eps=1e-5)
    assert jnp.allclose(x_hat, ref_xhat, atol=1e-5, rtol=1e-5)
    assert jnp.allclose(log_det, ref_ld, atol=1e-5, rtol=1e-5)

    # Case 2: wider D — budget-driven tiling keeps it as one resident tile.
    N2, D2 = 8, 1024
    x2 = jax.random.normal(k3, (N2, D2), dtype=jnp.float32)
    gamma2 = 0.01 * jax.random.normal(k4, (1, D2), dtype=jnp.float32)
    beta2 = 0.01 * jax.random.normal(k5, (1, D2), dtype=jnp.float32)
    x_hat2, log_det2 = batchnorm_forward(x2, gamma2, beta2, eps=1e-5)
    jax.block_until_ready((x_hat2, log_det2))
    ref_xhat2, ref_ld2 = batchnorm_reference(x2, gamma2, beta2, eps=1e-5)
    assert jnp.allclose(x_hat2, ref_xhat2, atol=1e-5, rtol=1e-5)
    assert jnp.allclose(log_det2, ref_ld2, atol=1e-4, rtol=1e-5)

    # Case 3: force the multi-tile pipelined path with a ragged last feature
    # block (no wrapper pad/slice): D=1000, tile_d=256.
    N3, D3 = 8, 1000
    x3 = jax.random.normal(jax.random.fold_in(k0, 3), (N3, D3), dtype=jnp.float32)
    gamma3 = 0.01 * jax.random.normal(jax.random.fold_in(k1, 3), (1, D3), dtype=jnp.float32)
    beta3 = 0.01 * jax.random.normal(jax.random.fold_in(k2, 3), (1, D3), dtype=jnp.float32)
    x_hat3, log_det3 = batchnorm_forward(x3, gamma3, beta3, eps=1e-5, tile_d=256)
    jax.block_until_ready((x_hat3, log_det3))
    ref_xhat3, ref_ld3 = batchnorm_reference(x3, gamma3, beta3, eps=1e-5)
    assert jnp.allclose(x_hat3, ref_xhat3, atol=1e-5, rtol=1e-5)
    assert jnp.allclose(log_det3, ref_ld3, atol=1e-4, rtol=1e-5)

    # Case 4: exercise the streamed (large-N) two-pass path with small tiles,
    # including ragged N and D blocks.
    N4, D4 = 36, 384
    x4 = jax.random.normal(jax.random.fold_in(k0, 4), (N4, D4), dtype=jnp.float32)
    gamma4 = 0.01 * jax.random.normal(jax.random.fold_in(k1, 4), (1, D4), dtype=jnp.float32)
    beta4 = 0.01 * jax.random.normal(jax.random.fold_in(k2, 4), (1, D4), dtype=jnp.float32)
    x_hat4, log_det4 = batchnorm_forward_streamed(
        x4, gamma4, beta4, eps=1e-5, tile_n=16, tile_d=256)
    jax.block_until_ready((x_hat4, log_det4))
    ref_xhat4, ref_ld4 = batchnorm_reference(x4, gamma4, beta4, eps=1e-5)
    assert jnp.allclose(x_hat4, ref_xhat4, atol=1e-4, rtol=1e-4)
    assert jnp.allclose(log_det4, ref_ld4, atol=1e-4, rtol=1e-4)

    print("KERNEL_OK")
</pallas_src>

<mosaic_0001>
module attributes {stable_mosaic.version = 11 : i64} {
  func.func @_batchnorm_kernel(%arg0: i32, %arg1: memref<8x32xf32, #tpu.memory_space<vmem>>, %arg2: memref<1x32xf32, #tpu.memory_space<vmem>>, %arg3: memref<1x32xf32, #tpu.memory_space<vmem>>, %arg4: memref<8x32xf32, #tpu.memory_space<vmem>>, %arg5: memref<1x32xf32, #tpu.memory_space<vmem>>) attributes {dimension_semantics = [#tpu.dimension_semantics<parallel>], iteration_bounds = array<i64: 1>, scalar_prefetch = 0 : i64, scratch_operands = 0 : i64, tpu.core_type = #tpu.core_type<tc>, window_params = [{transform_indices = @transform_0, window_bounds = array<i64: 8, 32>}, {transform_indices = @transform_1, window_bounds = array<i64: 1, 32>}, {transform_indices = @transform_2, window_bounds = array<i64: 1, 32>}, {transform_indices = @transform_3, window_bounds = array<i64: 8, 32>}, {transform_indices = @transform_4, window_bounds = array<i64: 1, 32>}]} {
    %c0 = arith.constant 0 : index
    %c0_0 = arith.constant 0 : index
    %0 = vector.load %arg1[%c0, %c0_0] : memref<8x32xf32, #tpu.memory_space<vmem>>, vector<8x32xf32>
    %cst = arith.constant dense<0.000000e+00> : vector<32xf32>
    %1 = vector.multi_reduction <add>, %0, %cst [0] : vector<8x32xf32> to vector<32xf32>
    %2 = vector.shape_cast %1 : vector<32xf32> to vector<1x32xf32>
    %cst_1 = arith.constant 8.000000e+00 : f32
    %3 = vector.broadcast %cst_1 : f32 to vector<1x32xf32>
    %4 = arith.divf %2, %3 : vector<1x32xf32>
    %5 = vector.broadcast %4 : vector<1x32xf32> to vector<8x32xf32>
    %6 = arith.subf %0, %5 : vector<8x32xf32>
    %7 = arith.mulf %6, %6 : vector<8x32xf32>
    %cst_2 = arith.constant dense<0.000000e+00> : vector<32xf32>
    %8 = vector.multi_reduction <add>, %7, %cst_2 [0] : vector<8x32xf32> to vector<32xf32>
    %9 = vector.shape_cast %8 : vector<32xf32> to vector<1x32xf32>
    %cst_3 = arith.constant 7.000000e+00 : f32
    %10 = vector.broadcast %cst_3 : f32 to vector<1x32xf32>
    %11 = arith.divf %9, %10 : vector<1x32xf32>
    %cst_4 = arith.constant 9.99999974E-6 : f32
    %12 = vector.broadcast %cst_4 : f32 to vector<1x32xf32>
    %13 = arith.addf %11, %12 : vector<1x32xf32>
    %c0_5 = arith.constant 0 : index
    %c0_6 = arith.constant 0 : index
    %14 = vector.load %arg2[%c0_5, %c0_6] : memref<1x32xf32, #tpu.memory_space<vmem>>, vector<1x32xf32>
    %c0_7 = arith.constant 0 : index
    %c0_8 = arith.constant 0 : index
    %15 = vector.load %arg3[%c0_7, %c0_8] : memref<1x32xf32, #tpu.memory_space<vmem>>, vector<1x32xf32>
    %16 = math.rsqrt %13 : vector<1x32xf32>
    %17 = math.exp %14 : vector<1x32xf32>
    %18 = arith.mulf %16, %17 : vector<1x32xf32>
    %19 = vector.broadcast %18 : vector<1x32xf32> to vector<8x32xf32>
    %20 = arith.mulf %6, %19 : vector<8x32xf32>
    %21 = vector.broadcast %15 : vector<1x32xf32> to vector<8x32xf32>
    %22 = arith.addf %20, %21 : vector<8x32xf32>
    %c0_9 = arith.constant 0 : index
    %c0_10 = arith.constant 0 : index
    %23 = vector.load %arg4[%c0_9, %c0_10] : memref<8x32xf32, #tpu.memory_space<vmem>>, vector<8x32xf32>
    tpu.vector_store %arg4[%c0_9, %c0_10], %22 {strides = array<i32>} : memref<8x32xf32, #tpu.memory_space<vmem>>, vector<8x32xf32>,
    %24 = math.log %13 : vector<1x32xf32>
    %cst_11 = arith.constant 5.000000e-01 : f32
    %25 = vector.broadcast %cst_11 : f32 to vector<1x32xf32>
    %26 = arith.mulf %25, %24 : vector<1x32xf32>
    %27 = arith.subf %14, %26 : vector<1x32xf32>
    %c0_12 = arith.constant 0 : index
    %c0_13 = arith.constant 0 : index
    %28 = vector.load %arg5[%c0_12, %c0_13] : memref<1x32xf32, #tpu.memory_space<vmem>>, vector<1x32xf32>
    tpu.vector_store %arg5[%c0_12, %c0_13], %27 {strides = array<i32>} : memref<1x32xf32, #tpu.memory_space<vmem>>, vector<1x32xf32>,
    return
  }
  func.func @transform_0(%arg0: i32) -> (i32, i32) {
    %c0_i32 = arith.constant 0 : i32
    %c0_i32_0 = arith.constant 0 : i32
    return %c0_i32, %arg0 : i32, i32
  }
  func.func @transform_1(%arg0: i32) -> (i32, i32) {
    %c0_i32 = arith.constant 0 : i32
    %c0_i32_0 = arith.constant 0 : i32
    return %c0_i32, %arg0 : i32, i32
  }
  func.func @transform_2(%arg0: i32) -> (i32, i32) {
    %c0_i32 = arith.constant 0 : i32
    %c0_i32_0 = arith.constant 0 : i32
    return %c0_i32, %arg0 : i32, i32
  }
  func.func @transform_3(%arg0: i32) -> (i32, i32) {
    %c0_i32 = arith.constant 0 : i32
    %c0_i32_0 = arith.constant 0 : i32
    return %c0_i32, %arg0 : i32, i32
  }
  func.func @transform_4(%arg0: i32) -> (i32, i32) {
    %c0_i32 = arith.constant 0 : i32
    %c0_i32_0 = arith.constant 0 : i32
    return %c0_i32, %arg0 : i32, i32
  }
}

</mosaic_0001>

<llo_original>
// kernel: tpu_custom_call.1
$region0: #{tpu_custom_call.1}
  #allocation0 [shape = 'u32[]', space=smem, size = 0x4, offset = 0x4, fixed_abs, tag = 'smem constant byte address 0x4 - core index']
  #allocation1 [shape = 'u32[72,128]{1,0:T(1,128)}', space=vmem, size = 0x9000, scoped, tag = 'internal scratch']
  %s0 = inlined_call_operand.hbm [shape: f32[8,32], index: 0, kind: input, shape index: {}]
  %s1 = inlined_call_operand.hbm [shape: f32[1,32], index: 1, kind: input, shape index: {}]
  %s2 = inlined_call_operand.vmem [shape: f32[1,32], index: 2, kind: input, shape index: {}]
  %s3 = inlined_call_operand.hbm [shape: f32[8,32], index: 3, kind: output, shape index: {0}]
  %s4 = inlined_call_operand.hbm [shape: f32[1,32], index: 4, kind: output, shape index: {1}]
  %5 = xla_tuple %s3, %s4
  %s6 = sld [smem:[#allocation0]]
  $region38: #{tpu_custom_call.1} parent=0
    _
  %s8 = ssub.s32 1, %s6
  %s9 = scalar_select 0, %s8, %s6
  $region1: #{tpu_custom_call.1} parent=0
    #allocation2 [shape = 'u8[4096]{0}', space=vmem, size = 0x1000, scoped, tag = 'input window, operand 0, single buffered']
    #allocation3 [shape = 's32[1]{0}', space=sflag, size = 0x4, scoped, tag = 'scoped memory for tpu_custom_call.1']
    #allocation4 [shape = 's32[1]{0}', space=sflag, size = 0x4, scoped, tag = 'scoped memory for tpu_custom_call.1']
    #allocation5 [shape = 'u8[512]{0}', space=vmem, size = 0x400, scoped, tag = 'input window, operand 1, single buffered']
    #allocation6 [shape = 's32[1]{0}', space=sflag, size = 0x4, scoped, tag = 'scoped memory for tpu_custom_call.1']
    #allocation7 [shape = 'u8[4096]{0}', space=vmem, size = 0x1000, scoped, tag = 'output window, operand 0, single buffered']
    #allocation8 [shape = 'u8[512]{0}', space=vmem, size = 0x400, scoped, tag = 'output window, operand 1, single buffered']
    #allocation9 [shape = 's32[1]{0}', space=sflag, size = 0x4, scoped, tag = 'scoped memory for tpu_custom_call.1']
    %10 = vsyncpa [#allocation3], 0
    %11 = vsyncpa [#allocation6], 0
    %12 = vsyncpa [#allocation4], 0
    %13 = vsyncpa [#allocation9], 0
    // Predicated region
    $region2: #{tpu_custom_call.1} parent=1 // pred_check
      _
    $region3: #{tpu_custom_call.1} parent=1 // pred_check_branch
      %15 = sbr.rel (0) target = $region5
    $region4: #{tpu_custom_call.1} parent=1 // pred_region
      %17 = vsyncadd [#allocation3], 0
      %s19 = sshll.u32 %s0, 4
      %s20 = int_to_ptr.hbm [resolvable:$true] %s19
      %s21 = sshll.u32 [#allocation2], 4
      %s22 = int_to_ptr.vmem [resolvable:$true] %s21
      %24 = dma.hbm_to_vmem [thread:$0]  %s20, 128, %s22, [#allocation3]
    $region5: #{tpu_custom_call.1} parent=1 // pred_fallthru
      _
    // Predicated region
    $region6: #{tpu_custom_call.1} parent=1 // pred_check
      _
    $region7: #{tpu_custom_call.1} parent=1 // pred_check_branch
      %26 = sbr.rel (0) target = $region9
    $region8: #{tpu_custom_call.1} parent=1 // pred_region
      %28 = vsyncadd [#allocation6], 0
      %s30 = sshll.u32 %s1, 4
      %s31 = int_to_ptr.hbm [resolvable:$true] %s30
      %s32 = sshll.u32 [#allocation5], 4
      %s33 = int_to_ptr.vmem [resolvable:$true] %s32
      %35 = dma.hbm_to_vmem [thread:$0]  %s31, 16, %s33, [#allocation6]
    $region9: #{tpu_custom_call.1} parent=1 // pred_fallthru
      _
    // Predicated region
    $region10: #{tpu_custom_call.1} parent=1 // pred_check
      _
    $region11: #{tpu_custom_call.1} parent=1 // pred_check_branch
      %37 = sbr.rel (0) target = $region13
    $region12: #{tpu_custom_call.1} parent=1 // pred_region
      _
    $region13: #{tpu_custom_call.1} parent=1 // pred_fallthru
      _
    // Predicated region
    $region14: #{tpu_custom_call.1} parent=1 // pred_check
      _
    $region15: #{tpu_custom_call.1} parent=1 // pred_check_branch
      %39 = sbr.rel (0) target = $region17
    $region16: #{tpu_custom_call.1} parent=1 // pred_region
      %41 = dma.done [#allocation3], 128
    $region17: #{tpu_custom_call.1} parent=1 // pred_fallthru
      _
    // Predicated region
    $region18: #{tpu_custom_call.1} parent=1 // pred_check
      _
    $region19: #{tpu_custom_call.1} parent=1 // pred_check_branch
      %43 = sbr.rel (0) target = $region21
    $region20: #{tpu_custom_call.1} parent=1 // pred_region
      %45 = dma.done [#allocation6], 16
    $region21: #{tpu_custom_call.1} parent=1 // pred_fallthru
      _
    %v46 = vld [vmem:[#allocation2] sm:$0xff]
    %vm47 = vcmask 261120
    %v48 = vsel %vm47, %v46, 0.0
    %v49 = vrot.slane %v48, 4
    %v50 = vadd.f32 %v48, %v49
    %v51 = vrot.slane %v50, 2
    %v52 = vadd.f32 %v50, %v51
    %v53 = vrot.slane %v52, 1
    %v54 = vadd.f32 %v52, %v53
    %v55 = vrcp.pop 8.0
    %v56 = vmul.f32 8.0, %v55
    %v57 = vsub.f32 1.0, %v56
    %v58 = vmul.f32 %v55, %v57
    %v59 = vadd.f32 %v55, %v58
    %vm60 = vweird.f32 %v55
    %v61 = vsel %vm60, %v55, %v59
    %v62 = vmul.f32 %v54, %v61
    %v63 = vsub.f32 %v46, %v62
    %v64 = vmul.f32 %v63, %v63
    %v65 = vsel %vm47, %v64, 0.0
    %v66 = vrot.slane %v65, 4
    %v67 = vadd.f32 %v65, %v66
    %v68 = vrot.slane %v67, 2
    %v69 = vadd.f32 %v67, %v68
    %v70 = vrot.slane %v69, 1
    %v71 = vadd.f32 %v69, %v70
    %v72 = vrcp.pop 7.0
    %v73 = vmul.f32 7.0, %v72
    %v74 = vsub.f32 1.0, %v73
    %v75 = vmul.f32 %v72, %v74
    %v76 = vadd.f32 %v72, %v75
    %vm77 = vweird.f32 %v72
    %v78 = vsel %vm77, %v72, %v76
    %v79 = vmul.f32 %v71, %v78
    %v80 = vadd.f32 %v79, 1e-05
    %v81 = vld [vmem:[#allocation5] sm:$0x1]
    %v82 = vld [vmem:[%s2] sm:$0x1]
    %v83 = vrsqrt.pop %v80
    %v84 = vmul.f32 %v83, %v80
    %v85 = vmul.f32 %v84, %v83
    %v86 = vmul.f32 0.5, %v85
    %v87 = vsub.f32 1.5, %v86
    %v88 = vmul.f32 %v83, %v87
    %vm89 = vweird.f32 %v80
    %vm90 = vweird.f32 %v83
    %vm91 = vmor %vm89, %vm90
    %v92 = vsel %vm91, %v83, %v88
    %v93 = vmul.f32 %v81, 1.442695
    %v94 = vpow.pop %v93
    %v95 = vmul.f32 %v92, %v94
    %v96 = vperm.slane %v95, 0
    %v97 = vmul.f32 %v63, %v96
    %v99 = vperm.slane %v82, 0
    %v101 = vadd.f32 %v97, %v99
    %102 = vst.msk [vmem:[#allocation7] sm:$0xff] %vm47, %v101
    %v103 = vlog2.pop %v80
    %v104 = vmul.f32 %v103, 0.6931472
    %v105 = vmul.f32 %v104, 0.5
    %v106 = vsub.f32 %v81, %v105
    %vm107 = vcmask 253952
    %108 = vst.msk [vmem:[#allocation8] sm:$0x1] %vm107, %v106
    // Predicated region
    $region22: #{tpu_custom_call.1} parent=1 // pred_check
      _
    $region23: #{tpu_custom_call.1} parent=1 // pred_check_branch
      %110 = sbr.rel (0) target = $region25
    $region24: #{tpu_custom_call.1} parent=1 // pred_region
      %112 = vsyncadd [#allocation4], 0
      %s114 = sshll.u32 [#allocation7], 4
      %s115 = int_to_ptr.vmem [resolvable:$true] %s114
      %s116 = sshll.u32 %s3, 4
      %s117 = int_to_ptr.hbm [resolvable:$true] %s116
      %119 = dma.vmem_to_hbm [thread:$0]  %s115, 128, %s117, [#allocation4]
    $region25: #{tpu_custom_call.1} parent=1 // pred_fallthru
      _
    // Predicated region
    $region26: #{tpu_custom_call.1} parent=1 // pred_check
      _
    $region27: #{tpu_custom_call.1} parent=1 // pred_check_branch
      %121 = sbr.rel (0) target = $region29
    $region28: #{tpu_custom_call.1} parent=1 // pred_region
      %123 = vsyncadd [#allocation9], 0
      %s125 = sshll.u32 [#allocation8], 4
      %s126 = int_to_ptr.vmem [resolvable:$true] %s125
      %s127 = sshll.u32 %s4, 4
      %s128 = int_to_ptr.hbm [resolvable:$true] %s127
      %130 = dma.vmem_to_hbm [thread:$0]  %s126, 16, %s128, [#allocation9]
    $region29: #{tpu_custom_call.1} parent=1 // pred_fallthru
      _
    // Predicated region
    $region30: #{tpu_custom_call.1} parent=1 // pred_check
      _
    $region31: #{tpu_custom_call.1} parent=1 // pred_check_branch
      %132 = sbr.rel (0) target = $region33
    $region32: #{tpu_custom_call.1} parent=1 // pred_region
      %134 = dma.done [#allocation4], 128
    $region33: #{tpu_custom_call.1} parent=1 // pred_fallthru
      _
    // Predicated region
    $region34: #{tpu_custom_call.1} parent=1 // pred_check
      _
    $region35: #{tpu_custom_call.1} parent=1 // pred_check_branch
      %136 = sbr.rel (0) target = $region37
    $region36: #{tpu_custom_call.1} parent=1 // pred_region
      %138 = dma.done [#allocation9], 16
    $region37: #{tpu_custom_call.1} parent=1 // pred_fallthru
      _
    %139 = vsyncpa [#allocation3], 1
    %140 = vsyncpa [#allocation6], 1
    %141 = vsyncpa [#allocation4], 1
    %142 = vsyncpa [#allocation9], 1

</llo_original>
